<compile_context>
chip_gen: v5e
topology: v5e:2x2
jax: 0.10.0
libtpu: 0.0.40
codegen_flags: <defaults>
</compile_context>

<pallas_src>
import jax
import jax.numpy as jnp
from jax.experimental import pallas as pl


def _embedding_kernel(x_ref, w1_ref, b1_ref, w2_ref, b2_ref, o_ref):
    """out = ReLU(x @ W1 + b1) @ W2 + b2 for the whole (concatenated) batch.

    x/W1/W2 are bf16 MXU feeds; the dot accumulators, bias-add and ReLU stay
    in f32.
    """
    h = jnp.dot(x_ref[...], w1_ref[...],
                preferred_element_type=jnp.float32)        # [R, H] f32 acc
    h = jnp.maximum(h + b1_ref[...], 0.0)                  # f32 on the VPU
    out = jnp.dot(h.astype(w2_ref.dtype), w2_ref[...],
                  preferred_element_type=jnp.float32)      # [R, E] f32 acc
    o_ref[...] = (out + b2_ref[...]).astype(o_ref.dtype)


def make_embedding_net(d_in, hidden, emb_dim, *, weight_dtype=jnp.bfloat16,
                       out_dtype=jnp.float32, seed=42):
    """Build deterministic params and the fused embedding callables.

    Returns (params, embed, triplet_forward):
      embed(x):                [R, d_in]            -> [R, emb_dim]
      triplet_forward(a,p,n):  3 x [B, d_in]        -> 3 x [B, emb_dim]
    Both paths use a single grid-less pallas_call (whole-array VMEM blocks).
    """
    k1, k2, k3, k4 = jax.random.split(jax.random.PRNGKey(seed), 4)
    w1 = (jax.random.normal(k1, (d_in, hidden), jnp.float32) * 0.02).astype(weight_dtype)
    b1 = jax.random.normal(k2, (1, hidden), jnp.float32) * 0.02            # f32
    w2 = (jax.random.normal(k3, (hidden, emb_dim), jnp.float32) * 0.02).astype(weight_dtype)
    b2 = jax.random.normal(k4, (1, emb_dim), jnp.float32) * 0.02           # f32
    params = (w1, b1, w2, b2)

    def _embed_rows(x_rows):
        rows = x_rows.shape[0]
        # bf16 MXU feed; the cast fuses into the surrounding copy/concat.
        x_bf16 = x_rows.astype(jnp.bfloat16)
        flops = 2 * rows * (d_in * hidden + hidden * emb_dim)
        bytes_accessed = (
            rows * d_in * 2                                         # x (bf16)
            + w1.size * w1.dtype.itemsize + b1.size * 4
            + w2.size * w2.dtype.itemsize + b2.size * 4
            + rows * emb_dim * jnp.dtype(out_dtype).itemsize)       # output
        return pl.pallas_call(
            _embedding_kernel,
            out_shape=jax.ShapeDtypeStruct((rows, emb_dim), out_dtype),
            # No grid: every operand is one whole-array VMEM block, weights
            # are DMA'd exactly once, no per-step pipeline overhead.
            cost_estimate=pl.CostEstimate(
                flops=flops, transcendentals=0,
                bytes_accessed=bytes_accessed),
        )(x_bf16, w1, b1, w2, b2)

    @jax.jit
    def embed(x):
        return _embed_rows(x)

    @jax.jit
    def triplet_forward(x1, x2, x3):
        b = x1.shape[0]
        xs = jnp.concatenate([x1, x2, x3], axis=0)        # [3B, d_in]
        out = _embed_rows(xs)                             # ONE kernel launch
        return out[:b], out[b:2 * b], out[2 * b:]

    return params, embed, triplet_forward


class TripletNet:
    """JAX/Pallas port of the PyTorch TripletNet wrapper (shared weights)."""

    def __init__(self, embed, triplet_forward):
        self._embed = embed
        self._forward = triplet_forward

    def forward(self, x1, x2, x3):
        # Anchor / positive / negative fused into one kernel invocation.
        return self._forward(x1, x2, x3)

    def get_embedding(self, x):
        return self._embed(x)


if __name__ == "__main__":
    # Small shapes: batch=8, input features=256, hidden=128, embedding=128.
    B, D_IN, HIDDEN, EMB = 8, 256, 128, 128

    params, embed, triplet_forward = make_embedding_net(D_IN, HIDDEN, EMB)
    net = TripletNet(embed, triplet_forward)

    key = jax.random.PRNGKey(0)
    kx1, kx2, kx3 = jax.random.split(key, 3)
    x1 = jax.random.normal(kx1, (B, D_IN), jnp.float32)
    x2 = jax.random.normal(kx2, (B, D_IN), jnp.float32)
    x3 = jax.random.normal(kx3, (B, D_IN), jnp.float32)

    o1, o2, o3 = net.forward(x1, x2, x3)
    jax.block_until_ready((o1, o2, o3))

    # Reference with the SAME bf16 feed casts (f32 accumulation), so the
    # tolerance can stay tight.
    w1, b1, w2, b2 = params

    def ref(x):
        h = jnp.dot(x.astype(jnp.bfloat16), w1,
                    preferred_element_type=jnp.float32) + b1
        h = jnp.maximum(h, 0.0)
        return jnp.dot(h.astype(w2.dtype), w2,
                       preferred_element_type=jnp.float32) + b2

    assert o1.shape == (B, EMB) and o2.shape == (B, EMB) and o3.shape == (B, EMB)
    assert jnp.allclose(o1, ref(x1), atol=2e-3, rtol=2e-3)
    assert jnp.allclose(o2, ref(x2), atol=2e-3, rtol=2e-3)
    assert jnp.allclose(o3, ref(x3), atol=2e-3, rtol=2e-3)

    # get_embedding path (rows=B instead of rows=3B) goes through the same
    # kernel body; per-row results should match the fused forward pass.
    e1 = net.get_embedding(x1)
    jax.block_until_ready(e1)
    assert jnp.allclose(e1, o1, atol=1e-5, rtol=1e-5)

    print("KERNEL_OK")
</pallas_src>

<mosaic_0001>
module attributes {stable_mosaic.version = 11 : i64} {
  func.func @_embedding_kernel(%arg0: memref<24x256xbf16, #tpu.memory_space<vmem>>, %arg1: memref<256x128xbf16, #tpu.memory_space<vmem>>, %arg2: memref<1x128xf32, #tpu.memory_space<vmem>>, %arg3: memref<128x128xbf16, #tpu.memory_space<vmem>>, %arg4: memref<1x128xf32, #tpu.memory_space<vmem>>, %arg5: memref<24x128xf32, #tpu.memory_space<vmem>>) attributes {dimension_semantics = [], scalar_prefetch = 0 : i64, scratch_operands = 0 : i64, tpu.core_type = #tpu.core_type<tc>} {
    %c0 = arith.constant 0 : index
    %c0_0 = arith.constant 0 : index
    %0 = vector.load %arg0[%c0, %c0_0] : memref<24x256xbf16, #tpu.memory_space<vmem>>, vector<24x256xbf16>
    %c0_1 = arith.constant 0 : index
    %c0_2 = arith.constant 0 : index
    %1 = vector.load %arg1[%c0_1, %c0_2] : memref<256x128xbf16, #tpu.memory_space<vmem>>, vector<256x128xbf16>
    %cst = arith.constant dense<0.000000e+00> : vector<24x128xf32>
    %2 = tpu.matmul %0, %1, %cst {dimension_numbers = #tpu.dot_dimension_numbers<[1], [0], [0], [1], [0, 0, 1, 1], [], []>} : vector<24x256xbf16>, vector<256x128xbf16>, vector<24x128xf32> -> vector<24x128xf32>
    %c0_3 = arith.constant 0 : index
    %c0_4 = arith.constant 0 : index
    %3 = vector.load %arg2[%c0_3, %c0_4] : memref<1x128xf32, #tpu.memory_space<vmem>>, vector<1x128xf32>
    %4 = vector.broadcast %3 : vector<1x128xf32> to vector<24x128xf32>
    %5 = arith.addf %2, %4 : vector<24x128xf32>
    %cst_5 = arith.constant 0.000000e+00 : f32
    %6 = vector.broadcast %cst_5 : f32 to vector<24x128xf32>
    %7 = arith.maximumf %5, %6 : vector<24x128xf32>
    %8 = arith.truncf %7 : vector<24x128xf32> to vector<24x128xbf16>
    %c0_6 = arith.constant 0 : index
    %c0_7 = arith.constant 0 : index
    %9 = vector.load %arg3[%c0_6, %c0_7] : memref<128x128xbf16, #tpu.memory_space<vmem>>, vector<128x128xbf16>
    %cst_8 = arith.constant dense<0.000000e+00> : vector<24x128xf32>
    %10 = tpu.matmul %8, %9, %cst_8 {dimension_numbers = #tpu.dot_dimension_numbers<[1], [0], [0], [1], [0, 0, 1, 1], [], []>} : vector<24x128xbf16>, vector<128x128xbf16>, vector<24x128xf32> -> vector<24x128xf32>
    %c0_9 = arith.constant 0 : index
    %c0_10 = arith.constant 0 : index
    %11 = vector.load %arg4[%c0_9, %c0_10] : memref<1x128xf32, #tpu.memory_space<vmem>>, vector<1x128xf32>
    %12 = vector.broadcast %11 : vector<1x128xf32> to vector<24x128xf32>
    %13 = arith.addf %10, %12 : vector<24x128xf32>
    %c0_11 = arith.constant 0 : index
    %c0_12 = arith.constant 0 : index
    %14 = vector.load %arg5[%c0_11, %c0_12] : memref<24x128xf32, #tpu.memory_space<vmem>>, vector<24x128xf32>
    tpu.vector_store %arg5[%c0_11, %c0_12], %13 {strides = array<i32>} : memref<24x128xf32, #tpu.memory_space<vmem>>, vector<24x128xf32>,
    return
  }
}

</mosaic_0001>

<llo_original>
// kernel: triplet_forward.1
$region0: #{triplet_forward.1}
  #allocation0 [shape = 'u32[]', space=smem, size = 0x4, offset = 0x4, fixed_abs, tag = 'smem constant byte address 0x4 - core index']
  #allocation1 [shape = 'u32[72,128]{1,0:T(1,128)}', space=vmem, size = 0x9000, scoped, tag = 'internal scratch']
  %s0 = inlined_call_operand.vmem [shape: bf16[24,256], index: 0, kind: input, shape index: {}]
  %s1 = inlined_call_operand.hbm [shape: bf16[256,128], index: 1, kind: input, shape index: {}]
  %s2 = inlined_call_operand.vmem [shape: f32[1,128], index: 2, kind: input, shape index: {}]
  %s3 = inlined_call_operand.vmem [shape: bf16[128,128], index: 3, kind: input, shape index: {}]
  %s4 = inlined_call_operand.vmem [shape: f32[1,128], index: 4, kind: input, shape index: {}]
  %s5 = inlined_call_operand.vmem [shape: f32[24,128], index: 5, kind: output, shape index: {}]
  %s6 = sld [smem:[#allocation0]]
  $region34: #{triplet_forward.1} parent=0
    _
  %s8 = ssub.s32 1, %s6
  %s9 = scalar_select 0, %s8, %s6
  $region1: #{triplet_forward.1} parent=0
    #allocation2 [shape = 'u8[65536]{0}', space=vmem, size = 0x10000, scoped, tag = 'input window, operand 1, single buffered']
    #allocation3 [shape = 's32[1]{0}', space=sflag, size = 0x4, scoped, tag = 'scoped memory for triplet_forward.1']
    %10 = vsyncpa [#allocation3], 0
    // Predicated region
    $region2: #{triplet_forward.1} parent=1 // pred_check
      _
    $region3: #{triplet_forward.1} parent=1 // pred_check_branch
      %12 = sbr.rel (0) target = $region5
    $region4: #{triplet_forward.1} parent=1 // pred_region
      _
    $region5: #{triplet_forward.1} parent=1 // pred_fallthru
      _
    // Predicated region
    $region6: #{triplet_forward.1} parent=1 // pred_check
      _
    $region7: #{triplet_forward.1} parent=1 // pred_check_branch
      %14 = sbr.rel (0) target = $region9
    $region8: #{triplet_forward.1} parent=1 // pred_region
      %16 = vsyncadd [#allocation3], 0
      %s17 = sshll.u32 %s1, 4
      %s18 = int_to_ptr.hbm [resolvable:$true] %s17
      %s19 = sshll.u32 [#allocation2], 4
      %s20 = int_to_ptr.vmem [resolvable:$true] %s19
      %25 = dma.hbm_to_vmem [thread:$0]  %s18, 2048, %s20, [#allocation3], 64, 64, 4
    $region9: #{triplet_forward.1} parent=1 // pred_fallthru
      _
    // Predicated region
    $region10: #{triplet_forward.1} parent=1 // pred_check
      _
    $region11: #{triplet_forward.1} parent=1 // pred_check_branch
      %27 = sbr.rel (0) target = $region13
    $region12: #{triplet_forward.1} parent=1 // pred_region
      _
    $region13: #{triplet_forward.1} parent=1 // pred_fallthru
      _
    // Predicated region
    $region14: #{triplet_forward.1} parent=1 // pred_check
      _
    $region15: #{triplet_forward.1} parent=1 // pred_check_branch
      %29 = sbr.rel (0) target = $region17
    $region16: #{triplet_forward.1} parent=1 // pred_region
      _
    $region17: #{triplet_forward.1} parent=1 // pred_fallthru
      _
    // Predicated region
    $region18: #{triplet_forward.1} parent=1 // pred_check
      _
    $region19: #{triplet_forward.1} parent=1 // pred_check_branch
      %31 = sbr.rel (0) target = $region21
    $region20: #{triplet_forward.1} parent=1 // pred_region
      _
    $region21: #{triplet_forward.1} parent=1 // pred_fallthru
      _
    // Predicated region
    $region22: #{triplet_forward.1} parent=1 // pred_check
      _
    $region23: #{triplet_forward.1} parent=1 // pred_check_branch
      %33 = sbr.rel (0) target = $region25
    $region24: #{triplet_forward.1} parent=1 // pred_region
      %35 = dma.done [#allocation3], 2048
    $region25: #{triplet_forward.1} parent=1 // pred_fallthru
      _
    %v36 = vld [vmem:[%s0] sm:$0xff]
    %v37 = vld [vmem:[%s0 + $0x8] sm:$0xff]
    %v38 = vld [vmem:[%s0 + $0x10] sm:$0xff]
    %v39 = vld [vmem:[#allocation2] sm:$0xf]
    %v40 = vld [vmem:[#allocation2 + $0x4] sm:$0xf]
    %v41 = vld [vmem:[#allocation2 + $0x8] sm:$0xf]
    %v42 = vld [vmem:[#allocation2 + $0xc] sm:$0xf]
    %v43 = vld [vmem:[#allocation2 + $0x10] sm:$0xf]
    %v44 = vld [vmem:[#allocation2 + $0x14] sm:$0xf]
    %v45 = vld [vmem:[#allocation2 + $0x18] sm:$0xf]
    %v46 = vld [vmem:[#allocation2 + $0x1c] sm:$0xf]
    %v47 = vld [vmem:[#allocation2 + $0x20] sm:$0xf]
    %v48 = vld [vmem:[#allocation2 + $0x24] sm:$0xf]
    %v49 = vld [vmem:[#allocation2 + $0x28] sm:$0xf]
    %v50 = vld [vmem:[#allocation2 + $0x2c] sm:$0xf]
    %v51 = vld [vmem:[#allocation2 + $0x30] sm:$0xf]
    %v52 = vld [vmem:[#allocation2 + $0x34] sm:$0xf]
    %v53 = vld [vmem:[#allocation2 + $0x38] sm:$0xf]
    %v54 = vld [vmem:[#allocation2 + $0x3c] sm:$0xf]
    %v55 = vld [vmem:[#allocation2 + $0x40] sm:$0xf]
    %v56 = vld [vmem:[#allocation2 + $0x44] sm:$0xf]
    %v57 = vld [vmem:[#allocation2 + $0x48] sm:$0xf]
    %v58 = vld [vmem:[#allocation2 + $0x4c] sm:$0xf]
    %v59 = vld [vmem:[#allocation2 + $0x50] sm:$0xf]
    %v60 = vld [vmem:[#allocation2 + $0x54] sm:$0xf]
    %v61 = vld [vmem:[#allocation2 + $0x58] sm:$0xf]
    %v62 = vld [vmem:[#allocation2 + $0x5c] sm:$0xf]
    %v63 = vld [vmem:[#allocation2 + $0x60] sm:$0xf]
    %v64 = vld [vmem:[#allocation2 + $0x64] sm:$0xf]
    %v65 = vld [vmem:[#allocation2 + $0x68] sm:$0xf]
    %v66 = vld [vmem:[#allocation2 + $0x6c] sm:$0xf]
    %v67 = vld [vmem:[#allocation2 + $0x70] sm:$0xf]
    %v68 = vld [vmem:[#allocation2 + $0x74] sm:$0xf]
    %v69 = vld [vmem:[#allocation2 + $0x78] sm:$0xf]
    %v70 = vld [vmem:[#allocation2 + $0x7c] sm:$0xf]
    %v71 = vld [vmem:[%s2] sm:$0x1]
    %v73 = vperm.slane %v71, 0
    %v78 = vunpack.c.l.b16 %v36
    %v79 = vunpack.c.h.b16 %v36
    %v80 = vunpack.c.l.b16 %v37
    %v81 = vunpack.c.h.b16 %v37
    %v82 = vunpack.c.l.b16 %v38
    %v83 = vunpack.c.h.b16 %v38
    %v84 = vpack.c.b16 %v80, %v78
    %v85 = vpack.c.b16 %v81, %v79
    %v86 = vpack.c.b16 %v82, %v82
    %v87 = vpack.c.b16 %v83, %v83
    %v124 = vunpack.c.l.b16 %v39
    %v125 = vunpack.c.l.b16 %v40
    %v126 = vunpack.c.l.b16 %v41
    %v127 = vunpack.c.l.b16 %v42
    %v128 = vunpack.c.l.b16 %v43
    %v129 = vunpack.c.l.b16 %v44
    %v130 = vunpack.c.l.b16 %v45
    %v131 = vunpack.c.l.b16 %v46
    %v132 = vunpack.c.l.b16 %v47
    %v133 = vunpack.c.l.b16 %v48
    %v134 = vunpack.c.l.b16 %v49
    %v135 = vunpack.c.l.b16 %v50
    %v136 = vunpack.c.l.b16 %v51
    %v137 = vunpack.c.l.b16 %v52
    %v138 = vunpack.c.l.b16 %v53
    %v139 = vunpack.c.l.b16 %v54
    %v140 = vunpack.c.l.b16 %v55
    %v141 = vunpack.c.l.b16 %v56
    %v142 = vunpack.c.l.b16 %v57
    %v143 = vunpack.c.l.b16 %v58
    %v144 = vunpack.c.l.b16 %v59
    %v145 = vunpack.c.l.b16 %v60
    %v146 = vunpack.c.l.b16 %v61
    %v147 = vunpack.c.l.b16 %v62
    %v148 = vunpack.c.l.b16 %v63
    %v149 = vunpack.c.l.b16 %v64
    %v150 = vunpack.c.l.b16 %v65
    %v151 = vunpack.c.l.b16 %v66
    %v152 = vunpack.c.l.b16 %v67
    %v153 = vunpack.c.l.b16 %v68
    %v154 = vunpack.c.l.b16 %v69
    %v155 = vunpack.c.l.b16 %v70
    %v156 = vpack.c.b16 %v125, %v124
    %v157 = vpack.c.b16 %v127, %v126
    %v158 = vpack.c.b16 %v129, %v128
    %v159 = vpack.c.b16 %v131, %v130
    %v160 = vpack.c.b16 %v133, %v132
    %v161 = vpack.c.b16 %v135, %v134
    %v162 = vpack.c.b16 %v137, %v136
    %v163 = vpack.c.b16 %v139, %v138
    %v164 = vpack.c.b16 %v141, %v140
    %v165 = vpack.c.b16 %v143, %v142
    %v166 = vpack.c.b16 %v145, %v144
    %v167 = vpack.c.b16 %v147, %v146
    %v168 = vpack.c.b16 %v149, %v148
    %v169 = vpack.c.b16 %v151, %v150
    %v170 = vpack.c.b16 %v153, %v152
    %v171 = vpack.c.b16 %v155, %v154
    %188 = vmatpush.bf16.msra.mxu0 %v163
    %189 = vmatpush.bf16.msra.mxu0 %v162
    %190 = vmatpush.bf16.msra.mxu0 %v161
    %191 = vmatpush.bf16.msra.mxu0 %v160
    %192 = vmatpush.bf16.msra.mxu0 %v159
    %193 = vmatpush.bf16.msra.mxu0 %v158
    %194 = vmatpush.bf16.msra.mxu0 %v157
    %195 = vmatpush.bf16.msra.mxu0 %v156
    %196 = vmatmul.bf16.gmra.mxu0 %v84
    %v197 = vpop.f32.mrf.mxu0
    %v198 = vadd.f32 %v73, %v197
    %v199 = vpop.f32.mrf.mxu0
    %v200 = vadd.f32 %v73, %v199
    %201 = vmatmul.bf16.gmra.mxu0 %v86
    %v202 = vpop.f32.mrf.mxu0
    %v203 = vadd.f32 %v73, %v202
    %v204 = vpop.f32.mrf.mxu0
    %205 = vdwg.mxu0
    %206 = vmatpush.bf16.msra.mxu0 %v171
    %207 = vmatpush.bf16.msra.mxu0 %v170
    %208 = vmatpush.bf16.msra.mxu0 %v169
    %209 = vmatpush.bf16.msra.mxu0 %v168
    %210 = vmatpush.bf16.msra.mxu0 %v167
    %211 = vmatpush.bf16.msra.mxu0 %v166
    %212 = vmatpush.bf16.msra.mxu0 %v165
    %213 = vmatpush.bf16.msra.mxu0 %v164
    %214 = vmatmul.bf16.gmra.mxu0 %v85
    %v215 = vpop.f32.mrf.mxu0
    %v216 = vadd.f32 %v198, %v215
    %v217 = vpop.f32.mrf.mxu0
    %v218 = vadd.f32 %v200, %v217
    %219 = vmatmul.bf16.gmra.mxu0 %v87
    %v220 = vpop.f32.mrf.mxu0
    %v221 = vadd.f32 %v203, %v220
    %v222 = vpop.f32.mrf.mxu0
    %223 = vdwg.mxu0
    %v224 = vmax.f32 %v216, 0.0
    %v225 = vmax.f32 %v218, 0.0
    %v226 = vmax.f32 %v221, 0.0
    %v227 = vpack.c.bf16 %v225, %v224
    %v228 = vpack.c.bf16 %v226, %v226
    %v229 = vld [vmem:[%s3] sm:$0xf]
    %v230 = vld [vmem:[%s3 + $0x4] sm:$0xf]
    %v231 = vld [vmem:[%s3 + $0x8] sm:$0xf]
    %v232 = vld [vmem:[%s3 + $0xc] sm:$0xf]
    %v233 = vld [vmem:[%s3 + $0x10] sm:$0xf]
    %v234 = vld [vmem:[%s3 + $0x14] sm:$0xf]
    %v235 = vld [vmem:[%s3 + $0x18] sm:$0xf]
    %v236 = vld [vmem:[%s3 + $0x1c] sm:$0xf]
    %v237 = vld [vmem:[%s3 + $0x20] sm:$0xf]
    %v238 = vld [vmem:[%s3 + $0x24] sm:$0xf]
    %v239 = vld [vmem:[%s3 + $0x28] sm:$0xf]
    %v240 = vld [vmem:[%s3 + $0x2c] sm:$0xf]
    %v241 = vld [vmem:[%s3 + $0x30] sm:$0xf]
    %v242 = vld [vmem:[%s3 + $0x34] sm:$0xf]
    %v243 = vld [vmem:[%s3 + $0x38] sm:$0xf]
    %v244 = vld [vmem:[%s3 + $0x3c] sm:$0xf]
    %v245 = vld [vmem:[%s4] sm:$0x1]
    %v247 = vperm.slane %v245, 0
    %v265 = vunpack.c.l.b16 %v229
    %v266 = vunpack.c.l.b16 %v230
    %v267 = vunpack.c.l.b16 %v231
    %v268 = vunpack.c.l.b16 %v232
    %v269 = vunpack.c.l.b16 %v233
    %v270 = vunpack.c.l.b16 %v234
    %v271 = vunpack.c.l.b16 %v235
    %v272 = vunpack.c.l.b16 %v236
    %v273 = vunpack.c.l.b16 %v237
    %v274 = vunpack.c.l.b16 %v238
    %v275 = vunpack.c.l.b16 %v239
    %v276 = vunpack.c.l.b16 %v240
    %v277 = vunpack.c.l.b16 %v241
    %v278 = vunpack.c.l.b16 %v242
    %v279 = vunpack.c.l.b16 %v243
    %v280 = vunpack.c.l.b16 %v244
    %v281 = vpack.c.b16 %v266, %v265
    %v282 = vpack.c.b16 %v268, %v267
    %v283 = vpack.c.b16 %v270, %v269
    %v284 = vpack.c.b16 %v272, %v271
    %v285 = vpack.c.b16 %v274, %v273
    %v286 = vpack.c.b16 %v276, %v275
    %v287 = vpack.c.b16 %v278, %v277
    %v288 = vpack.c.b16 %v280, %v279
    %297 = vmatpush.bf16.msra.mxu0 %v288
    %298 = vmatpush.bf16.msra.mxu0 %v287
    %299 = vmatpush.bf16.msra.mxu0 %v286
    %300 = vmatpush.bf16.msra.mxu0 %v285
    %301 = vmatpush.bf16.msra.mxu0 %v284
    %302 = vmatpush.bf16.msra.mxu0 %v283
    %303 = vmatpush.bf16.msra.mxu0 %v282
    %304 = vmatpush.bf16.msra.mxu0 %v281
    %305 = vmatmul.bf16.gmra.mxu0 %v227
    %v306 = vpop.f32.mrf.mxu0
    %v307 = vadd.f32 %v247, %v306
    %v308 = vpop.f32.mrf.mxu0
    %v309 = vadd.f32 %v247, %v308
    %310 = vmatmul.bf16.gmra.mxu0 %v228
    %v311 = vpop.f32.mrf.mxu0
    %v312 = vadd.f32 %v247, %v311
    %v313 = vpop.f32.mrf.mxu0
    %314 = vdwg.mxu0
    %315 = vst [vmem:[%s5] sm:$0xff] %v307
    %316 = vst [vmem:[%s5 + $0x8] sm:$0xff] %v309
    %317 = vst [vmem:[%s5 + $0x10] sm:$0xff] %v312
    // Predicated region
    $region26: #{triplet_forward.1} parent=1 // pred_check
      _
    $region27: #{triplet_forward.1} parent=1 // pred_check_branch
      %319 = sbr.rel (0) target = $region29
    $region28: #{triplet_forward.1} parent=1 // pred_region
      _
    $region29: #{triplet_forward.1} parent=1 // pred_fallthru
      _
    // Predicated region
    $region30: #{triplet_forward.1} parent=1 // pred_check
      _
    $region31: #{triplet_forward.1} parent=1 // pred_check_branch
      %321 = sbr.rel (0) target = $region33
    $region32: #{triplet_forward.1} parent=1 // pred_region
      _
    $region33: #{triplet_forward.1} parent=1 // pred_fallthru
      _
    %322 = vsyncpa [#allocation3], 1

</llo_original>
